<compile_context>
chip_gen: v6e
topology: v6e:2x2x1
jax: 0.10.0
libtpu: 0.0.40
codegen_flags: <defaults>
</compile_context>

<pallas_src>
import functools

import jax
import jax.numpy as jnp
from jax import lax
from jax.experimental import pallas as pl
from jax.experimental.pallas import tpu as pltpu


def _round_up(x, m):
    return ((x + m - 1) // m) * m


# ---------------------------------------------------------------------------
# Kernel 1: fused fcIn (Linear + ReLU; Dropout == identity at inference) and
# the LSTM input projection for all timesteps at once (row-parallel).
# ---------------------------------------------------------------------------
def _fcin_proj_kernel(x_ref, win_ref, bin_ref, wih_ref, bg_ref, o_ref):
    z = jnp.dot(x_ref[...], win_ref[...],
                preferred_element_type=jnp.float32) + bin_ref[...]
    z = jnp.maximum(z, 0.0)
    o_ref[...] = (jnp.dot(z, wih_ref[...],
                          preferred_element_type=jnp.float32)
                  + bg_ref[...]).astype(o_ref.dtype)


# ---------------------------------------------------------------------------
# Kernel 2: sequential LSTM recurrence.  Per step only gates_in[t] + h @ W_hh
# plus the element-wise cell math; Tc timesteps per grid step (unrolled
# fori_loop) so the per-grid-step pipeline overhead is amortized and the LLO
# scheduler can overlap the matmul with the previous step's EUP/VPU work.
# ---------------------------------------------------------------------------
def _lstm_recurrence_kernel(gates_ref, whh_ref, hseq_ref, h_scr, c_scr, *,
                            hp, tc):
    @pl.when(pl.program_id(1) == 0)          # first time-chunk of this batch tile
    def _():
        h_scr[...] = jnp.zeros_like(h_scr)
        c_scr[...] = jnp.zeros_like(c_scr)

    def step(t, carry):
        h, c = carry
        gates = gates_ref[t] + jnp.dot(h, whh_ref[...],
                                       preferred_element_type=jnp.float32)
        # Gate slices are lane-aligned because hp is a multiple of 128.
        i_g = jax.nn.sigmoid(gates[:, 0 * hp:1 * hp])
        f_g = jax.nn.sigmoid(gates[:, 1 * hp:2 * hp])
        g_g = jnp.tanh(gates[:, 2 * hp:3 * hp])
        o_g = jax.nn.sigmoid(gates[:, 3 * hp:4 * hp])
        c_new = f_g * c + i_g * g_g
        h_new = o_g * jnp.tanh(c_new)
        hseq_ref[t] = h_new
        return h_new, c_new

    h_f, c_f = lax.fori_loop(0, tc, step, (h_scr[...], c_scr[...]),
                             unroll=True)
    h_scr[...] = h_f
    c_scr[...] = c_f


# ---------------------------------------------------------------------------
# Kernel 3: fcOut Linear over all rows (lane-dense, O padded to 128).
# ---------------------------------------------------------------------------
def _linear_kernel(x_ref, w_ref, b_ref, o_ref):
    o_ref[...] = (jnp.dot(x_ref[...], w_ref[...],
                          preferred_element_type=jnp.float32)
                  + b_ref[...]).astype(o_ref.dtype)


# ---------------------------------------------------------------------------
# Weight preparation (done once in the wrapper, plain XLA).
# ---------------------------------------------------------------------------
def _prep_gate_weight(w, h, hp):
    """(4H, H) PyTorch layout -> (Hp, 4*Hp) transposed, per-gate zero-padded."""
    w4 = w.reshape(4, h, h)                                   # (gate, out, in)
    w4 = jnp.pad(w4, ((0, 0), (0, hp - h), (0, hp - h)))
    return jnp.transpose(w4, (2, 0, 1)).reshape(hp, 4 * hp)   # (in, gate*out)


def _prep_gate_bias(b, h, hp):
    b = b.reshape(4, h)
    b = jnp.pad(b, ((0, 0), (0, hp - h)))
    return b.reshape(1, 4 * hp)


def dyn_paras_lstm(x, params, *, time_chunk=16, max_row_tile=512,
                   max_batch_tile=256, vmem_limit_bytes=32 * 1024 * 1024):
    """DynParasLSTM forward: x [N, L, F] float32 -> [N, L, outLSTM] float32."""
    N, L, F = x.shape
    H = params["w_hh"].shape[1]
    O = params["w_out"].shape[0]
    f32 = jnp.float32

    # Lane/sublane-aligned padded sizes (zero padding is exact: padded hidden
    # units stay at 0 through the recurrence and never touch real units).
    Hp = _round_up(H, 128)
    Op = _round_up(O, 128)
    N8 = _round_up(N, 8)
    NB = min(N8, max_batch_tile)          # batch tile ("parallel" grid axis)
    Np = _round_up(N8, NB)
    Tc = min(L, time_chunk)               # time steps per sequential grid step
    Lp = _round_up(L, Tc)

    cparams = pltpu.CompilerParams(
        dimension_semantics=("parallel",),
        vmem_limit_bytes=vmem_limit_bytes)

    # --- prepare weights: pre-transposed, gate-padded, biases folded ---------
    win_t = jnp.pad(params["w_in"].astype(f32).T, ((0, 0), (0, Hp - H)))     # (F, Hp)
    bin_p = jnp.pad(params["b_in"].astype(f32).reshape(1, H),
                    ((0, 0), (0, Hp - H)))                                   # (1, Hp)
    wih_t = _prep_gate_weight(params["w_ih"].astype(f32), H, Hp)             # (Hp, 4Hp)
    whh_t = _prep_gate_weight(params["w_hh"].astype(f32), H, Hp)             # (Hp, 4Hp)
    bg_p = _prep_gate_bias((params["b_ih"] + params["b_hh"]).astype(f32),
                           H, Hp)                                            # (1, 4Hp)
    wout_t = jnp.pad(params["w_out"].astype(f32).T,
                     ((0, Hp - H), (0, Op - O)))                             # (Hp, Op)
    bout_p = jnp.pad(params["b_out"].astype(f32).reshape(1, O),
                     ((0, 0), (0, Op - O)))                                  # (1, Op)

    # --- stage 1: hoisted fcIn + input gate projection over all L*N rows -----
    x_lnf = jnp.transpose(x.astype(f32), (1, 0, 2))                 # (L, N, F)
    x_lnf = jnp.pad(x_lnf, ((0, Lp - L), (0, Np - N), (0, 0)))      # (Lp, Np, F)
    rows = Lp * Np
    TR = min(rows, max_row_tile)
    rows_p = _round_up(rows, TR)
    x_rows = jnp.pad(x_lnf.reshape(rows, F), ((0, rows_p - rows), (0, 0)))

    gates_rows = pl.pallas_call(
        _fcin_proj_kernel,
        out_shape=jax.ShapeDtypeStruct((rows_p, 4 * Hp), f32),
        grid_spec=pltpu.PrefetchScalarGridSpec(
            num_scalar_prefetch=0,
            grid=(rows_p // TR,),
            in_specs=[
                pl.BlockSpec((TR, F), lambda r: (r, 0)),
                pl.BlockSpec((F, Hp), lambda r: (0, 0)),
                pl.BlockSpec((1, Hp), lambda r: (0, 0)),
                pl.BlockSpec((Hp, 4 * Hp), lambda r: (0, 0)),
                pl.BlockSpec((1, 4 * Hp), lambda r: (0, 0)),
            ],
            out_specs=pl.BlockSpec((TR, 4 * Hp), lambda r: (r, 0)),
        ),
        compiler_params=cparams,
    )(x_rows, win_t, bin_p, wih_t, bg_p)
    gates_in = gates_rows[:rows].reshape(Lp, Np, 4 * Hp)

    # --- stage 2: sequential recurrence (only h @ W_hh + cell math) ----------
    h_seq = pl.pallas_call(
        functools.partial(_lstm_recurrence_kernel, hp=Hp, tc=Tc),
        out_shape=jax.ShapeDtypeStruct((Lp, Np, Hp), f32),
        grid_spec=pltpu.PrefetchScalarGridSpec(
            num_scalar_prefetch=0,
            grid=(Np // NB, Lp // Tc),          # (batch tiles, time chunks)
            in_specs=[
                pl.BlockSpec((Tc, NB, 4 * Hp), lambda b, c: (c, b, 0)),
                pl.BlockSpec((Hp, 4 * Hp), lambda b, c: (0, 0)),
            ],
            out_specs=pl.BlockSpec((Tc, NB, Hp), lambda b, c: (c, b, 0)),
            scratch_shapes=[pltpu.VMEM((NB, Hp), f32),   # h
                            pltpu.VMEM((NB, Hp), f32)],  # c
        ),
        compiler_params=pltpu.CompilerParams(
            dimension_semantics=("parallel", "arbitrary"),
            vmem_limit_bytes=vmem_limit_bytes),
    )(gates_in, whh_t)

    # --- stage 3: hoisted fcOut over all rows (lane-dense padded output) -----
    h_rows = jnp.pad(h_seq.reshape(rows, Hp), ((0, rows_p - rows), (0, 0)))
    out_rows = pl.pallas_call(
        _linear_kernel,
        out_shape=jax.ShapeDtypeStruct((rows_p, Op), f32),
        grid_spec=pltpu.PrefetchScalarGridSpec(
            num_scalar_prefetch=0,
            grid=(rows_p // TR,),
            in_specs=[
                pl.BlockSpec((TR, Hp), lambda r: (r, 0)),
                pl.BlockSpec((Hp, Op), lambda r: (0, 0)),
                pl.BlockSpec((1, Op), lambda r: (0, 0)),
            ],
            out_specs=pl.BlockSpec((TR, Op), lambda r: (r, 0)),
        ),
        compiler_params=cparams,
    )(h_rows, wout_t, bout_p)

    out = out_rows[:rows].reshape(Lp, Np, Op)[:L, :N, :O]
    return jnp.transpose(out, (1, 0, 2))                            # (N, L, O)


def init_params(key, in_lstm, hid_lstm, out_lstm):
    """Deterministic synthetic params (PyTorch-like uniform init)."""
    ks = jax.random.split(key, 9)

    def unif(k, shape, fan_in):
        b = 1.0 / jnp.sqrt(jnp.float32(fan_in))
        return jax.random.uniform(k, shape, jnp.float32, -b, b)

    return {
        "w_in":  unif(ks[0], (hid_lstm, in_lstm), in_lstm),
        "b_in":  unif(ks[1], (1, hid_lstm), in_lstm),
        "w_ih":  unif(ks[2], (4 * hid_lstm, hid_lstm), hid_lstm),
        "w_hh":  unif(ks[3], (4 * hid_lstm, hid_lstm), hid_lstm),
        "b_ih":  unif(ks[4], (1, 4 * hid_lstm), hid_lstm),
        "b_hh":  unif(ks[5], (1, 4 * hid_lstm), hid_lstm),
        "w_out": unif(ks[6], (out_lstm, hid_lstm), hid_lstm),
        "b_out": unif(ks[7], (1, out_lstm), hid_lstm),
    }


def reference(x, p):
    """Pure-JAX reference of the same forward pass (sanity check)."""
    z = jax.nn.relu(jnp.einsum("nlf,hf->nlh", x, p["w_in"]) + p["b_in"][0])
    N, L, _ = z.shape
    H = p["w_hh"].shape[1]
    h = jnp.zeros((N, H), jnp.float32)
    c = jnp.zeros((N, H), jnp.float32)
    outs = []
    for t in range(L):
        g = (z[:, t] @ p["w_ih"].T + h @ p["w_hh"].T
             + p["b_ih"][0] + p["b_hh"][0])
        i = jax.nn.sigmoid(g[:, :H])
        f = jax.nn.sigmoid(g[:, H:2 * H])
        gg = jnp.tanh(g[:, 2 * H:3 * H])
        o = jax.nn.sigmoid(g[:, 3 * H:])
        c = f * c + i * gg
        h = o * jnp.tanh(c)
        outs.append(h)
    hseq = jnp.stack(outs, axis=1)
    return jnp.einsum("nlh,oh->nlo", hseq, p["w_out"]) + p["b_out"][0]


if __name__ == "__main__":
    # Small shapes consistent with the module: x is [N, L, F]
    N, L = 2, 8
    inLSTM, hidLSTM, outLSTM = 4, 32, 16

    key = jax.random.PRNGKey(0)
    k_x, k_p = jax.random.split(key)
    x = jax.random.normal(k_x, (N, L, inLSTM), dtype=jnp.float32)
    params = init_params(k_p, inLSTM, hidLSTM, outLSTM)

    out = jax.block_until_ready(dyn_paras_lstm(x, params))
    ref = jax.block_until_ready(reference(x, params))

    assert out.shape == (N, L, outLSTM)
    assert jnp.allclose(out, ref, rtol=2e-2, atol=2e-3), (
        f"max abs diff {jnp.max(jnp.abs(out - ref))}")

    print("KERNEL_OK")
</pallas_src>

<mosaic_0001>
module attributes {stable_mosaic.version = 11 : i64} {
  func.func @_fcin_proj_kernel(%arg0: i32, %arg1: memref<64x4xf32, #tpu.memory_space<vmem>>, %arg2: memref<4x128xf32, #tpu.memory_space<vmem>>, %arg3: memref<1x128xf32, #tpu.memory_space<vmem>>, %arg4: memref<128x512xf32, #tpu.memory_space<vmem>>, %arg5: memref<1x512xf32, #tpu.memory_space<vmem>>, %arg6: memref<64x512xf32, #tpu.memory_space<vmem>>) attributes {dimension_semantics = [#tpu.dimension_semantics<parallel>], iteration_bounds = array<i64: 1>, scalar_prefetch = 0 : i64, scratch_operands = 0 : i64, tpu.core_type = #tpu.core_type<tc>, window_params = [{transform_indices = @transform_0, window_bounds = array<i64: 64, 4>}, {pipeline_mode = #tpu.pipeline_mode<synchronous>, transform_indices = @transform_1, window_bounds = array<i64: 4, 128>}, {pipeline_mode = #tpu.pipeline_mode<synchronous>, transform_indices = @transform_2, window_bounds = array<i64: 1, 128>}, {pipeline_mode = #tpu.pipeline_mode<synchronous>, transform_indices = @transform_3, window_bounds = array<i64: 128, 512>}, {pipeline_mode = #tpu.pipeline_mode<synchronous>, transform_indices = @transform_4, window_bounds = array<i64: 1, 512>}, {transform_indices = @transform_5, window_bounds = array<i64: 64, 512>}]} {
    %c0 = arith.constant 0 : index
    %c0_0 = arith.constant 0 : index
    %0 = vector.load %arg1[%c0, %c0_0] : memref<64x4xf32, #tpu.memory_space<vmem>>, vector<64x4xf32>
    %c0_1 = arith.constant 0 : index
    %c0_2 = arith.constant 0 : index
    %1 = vector.load %arg2[%c0_1, %c0_2] : memref<4x128xf32, #tpu.memory_space<vmem>>, vector<4x128xf32>
    %cst = arith.constant dense<0.000000e+00> : vector<64x128xf32>
    %2 = tpu.matmul %0, %1, %cst {dimension_numbers = #tpu.dot_dimension_numbers<[1], [0], [0], [1], [0, 0, 1, 1], [], []>} : vector<64x4xf32>, vector<4x128xf32>, vector<64x128xf32> -> vector<64x128xf32>
    %c0_3 = arith.constant 0 : index
    %c0_4 = arith.constant 0 : index
    %3 = vector.load %arg3[%c0_3, %c0_4] : memref<1x128xf32, #tpu.memory_space<vmem>>, vector<1x128xf32>
    %4 = vector.broadcast %3 : vector<1x128xf32> to vector<64x128xf32>
    %5 = arith.addf %2, %4 : vector<64x128xf32>
    %cst_5 = arith.constant 0.000000e+00 : f32
    %6 = vector.broadcast %cst_5 : f32 to vector<64x128xf32>
    %7 = arith.maximumf %5, %6 : vector<64x128xf32>
    %c0_6 = arith.constant 0 : index
    %c0_7 = arith.constant 0 : index
    %8 = vector.load %arg4[%c0_6, %c0_7] : memref<128x512xf32, #tpu.memory_space<vmem>>, vector<128x512xf32>
    %cst_8 = arith.constant dense<0.000000e+00> : vector<64x512xf32>
    %9 = tpu.matmul %7, %8, %cst_8 {dimension_numbers = #tpu.dot_dimension_numbers<[1], [0], [0], [1], [0, 0, 1, 1], [], []>} : vector<64x128xf32>, vector<128x512xf32>, vector<64x512xf32> -> vector<64x512xf32>
    %c0_9 = arith.constant 0 : index
    %c0_10 = arith.constant 0 : index
    %10 = vector.load %arg5[%c0_9, %c0_10] : memref<1x512xf32, #tpu.memory_space<vmem>>, vector<1x512xf32>
    %11 = vector.broadcast %10 : vector<1x512xf32> to vector<64x512xf32>
    %12 = arith.addf %9, %11 : vector<64x512xf32>
    %c0_11 = arith.constant 0 : index
    %c0_12 = arith.constant 0 : index
    %13 = vector.load %arg6[%c0_11, %c0_12] : memref<64x512xf32, #tpu.memory_space<vmem>>, vector<64x512xf32>
    tpu.vector_store %arg6[%c0_11, %c0_12], %12 {strides = array<i32>} : memref<64x512xf32, #tpu.memory_space<vmem>>, vector<64x512xf32>,
    return
  }
  func.func @transform_0(%arg0: i32) -> (i32, i32) {
    %c0_i32 = arith.constant 0 : i32
    %c0_i32_0 = arith.constant 0 : i32
    return %arg0, %c0_i32 : i32, i32
  }
  func.func @transform_1(%arg0: i32) -> (i32, i32) {
    %c0_i32 = arith.constant 0 : i32
    %c0_i32_0 = arith.constant 0 : i32
    %c0_i32_1 = arith.constant 0 : i32
    return %c0_i32, %c0_i32_0 : i32, i32
  }
  func.func @transform_2(%arg0: i32) -> (i32, i32) {
    %c0_i32 = arith.constant 0 : i32
    %c0_i32_0 = arith.constant 0 : i32
    %c0_i32_1 = arith.constant 0 : i32
    return %c0_i32, %c0_i32_0 : i32, i32
  }
  func.func @transform_3(%arg0: i32) -> (i32, i32) {
    %c0_i32 = arith.constant 0 : i32
    %c0_i32_0 = arith.constant 0 : i32
    %c0_i32_1 = arith.constant 0 : i32
    return %c0_i32, %c0_i32_0 : i32, i32
  }
  func.func @transform_4(%arg0: i32) -> (i32, i32) {
    %c0_i32 = arith.constant 0 : i32
    %c0_i32_0 = arith.constant 0 : i32
    %c0_i32_1 = arith.constant 0 : i32
    return %c0_i32, %c0_i32_0 : i32, i32
  }
  func.func @transform_5(%arg0: i32) -> (i32, i32) {
    %c0_i32 = arith.constant 0 : i32
    %c0_i32_0 = arith.constant 0 : i32
    return %arg0, %c0_i32 : i32, i32
  }
}

</mosaic_0001>

<llo_original>
// kernel: tpu_custom_call.1
$region0: #{tpu_custom_call.1}
  #allocation0 [shape = 'u32[]', space=smem, size = 0x4, offset = 0x4, fixed_abs, tag = 'smem constant byte address 0x4 - core index']
  #allocation1 [shape = 'u32[144,128]{1,0:T(1,128)}', space=vmem, size = 0x12000, scoped, tag = 'internal scratch']
  %s0 = inlined_call_operand.vmem [shape: f32[64,4], index: 0, kind: input, shape index: {}]
  %s1 = inlined_call_operand.vmem [shape: f32[4,128], index: 1, kind: input, shape index: {}]
  %s2 = inlined_call_operand.vmem [shape: f32[1,128], index: 2, kind: input, shape index: {}]
  %s3 = inlined_call_operand.hbm [shape: f32[128,512], index: 3, kind: input, shape index: {}]
  %s4 = inlined_call_operand.vmem [shape: f32[1,512], index: 4, kind: input, shape index: {}]
  %s5 = inlined_call_operand.hbm [shape: f32[64,512], index: 5, kind: output, shape index: {}]
  %s6 = sld [smem:[#allocation0]]
  $region34: #{tpu_custom_call.1} parent=0
    _
  %s8 = ssub.s32 1, %s6
  %s9 = scalar_select 0, %s8, %s6
  $region1: #{tpu_custom_call.1} parent=0
    #allocation2 [shape = 'u8[262144]{0}', space=vmem, size = 0x40000, scoped, tag = 'input window, operand 3, single buffered']
    #allocation3 [shape = 's32[1]{0}', space=sflag, size = 0x4, scoped, tag = 'scoped memory for tpu_custom_call.1']
    #allocation4 [shape = 's32[1]{0}', space=sflag, size = 0x4, scoped, tag = 'scoped memory for tpu_custom_call.1']
    #allocation5 [shape = 'u8[131072]{0}', space=vmem, size = 0x20000, scoped, tag = 'output window, operand 0, single buffered']
    %10 = vsyncpa [#allocation3], 0
    %11 = vsyncpa [#allocation4], 0
    // Predicated region
    $region2: #{tpu_custom_call.1} parent=1 // pred_check
      _
    $region3: #{tpu_custom_call.1} parent=1 // pred_check_branch
      %13 = sbr.rel (0) target = $region5
    $region4: #{tpu_custom_call.1} parent=1 // pred_region
      _
    $region5: #{tpu_custom_call.1} parent=1 // pred_fallthru
      _
    // Predicated region
    $region6: #{tpu_custom_call.1} parent=1 // pred_check
      _
    $region7: #{tpu_custom_call.1} parent=1 // pred_check_branch
      %15 = sbr.rel (0) target = $region9
    $region8: #{tpu_custom_call.1} parent=1 // pred_region
      _
    $region9: #{tpu_custom_call.1} parent=1 // pred_fallthru
      _
    // Predicated region
    $region10: #{tpu_custom_call.1} parent=1 // pred_check
      _
    $region11: #{tpu_custom_call.1} parent=1 // pred_check_branch
      %17 = sbr.rel (0) target = $region13
    $region12: #{tpu_custom_call.1} parent=1 // pred_region
      _
    $region13: #{tpu_custom_call.1} parent=1 // pred_fallthru
      _
    // Predicated region
    $region14: #{tpu_custom_call.1} parent=1 // pred_check
      _
    $region15: #{tpu_custom_call.1} parent=1 // pred_check_branch
      %19 = sbr.rel (0) target = $region17
    $region16: #{tpu_custom_call.1} parent=1 // pred_region
      %s21 = ssub.s32 8192, 8192
      %22 = vsyncadd [#allocation3], %s21
      %s23 = sshll.u32 [#allocation2], 4
      %s24 = int_to_ptr.vmem [resolvable:$true] %s23
      %29 = dma.hbm_to_vmem [thread:$0]  %s3, 8192, %s24, [#allocation3], 512, 512, 32
    $region17: #{tpu_custom_call.1} parent=1 // pred_fallthru
      _
    // Predicated region
    $region18: #{tpu_custom_call.1} parent=1 // pred_check
      _
    $region19: #{tpu_custom_call.1} parent=1 // pred_check_branch
      %31 = sbr.rel (0) target = $region21
    $region20: #{tpu_custom_call.1} parent=1 // pred_region
      _
    $region21: #{tpu_custom_call.1} parent=1 // pred_fallthru
      _
    // Predicated region
    $region22: #{tpu_custom_call.1} parent=1 // pred_check
      _
    $region23: #{tpu_custom_call.1} parent=1 // pred_check_branch
      %33 = sbr.rel (0) target = $region25
    $region24: #{tpu_custom_call.1} parent=1 // pred_region
      %34 = dma.done [#allocation3], 8192
    $region25: #{tpu_custom_call.1} parent=1 // pred_fallthru
      _
    %v35 = vld [vmem:[%s0] sm:$0xff]
    %v36 = vld [vmem:[%s0 + $0x8] sm:$0xff]
    %v37 = vld [vmem:[%s0 + $0x10] sm:$0xff]
    %v38 = vld [vmem:[%s0 + $0x18] sm:$0xff]
    %v39 = vld [vmem:[%s0 + $0x20] sm:$0xff]
    %v40 = vld [vmem:[%s0 + $0x28] sm:$0xff]
    %v41 = vld [vmem:[%s0 + $0x30] sm:$0xff]
    %v42 = vld [vmem:[%s0 + $0x38] sm:$0xff]
    %v43 = vld [vmem:[%s1] sm:$0xf]
    %v44 = vld [vmem:[%s2] sm:$0x1]
    %v46 = vlaneseq
    %v47 = vshrl.u32 %v46, 7
    %v48 = vsub.s32 0, %v47
    %v49 = vrot.slane %v44, %v48
    %vm51 = vcmask 31744
    %v53 = vsel %vm51, %v35, 0
    %v56 = vsel %vm51, %v36, 0
    %v59 = vsel %vm51, %v37, 0
    %v62 = vsel %vm51, %v38, 0
    %v65 = vsel %vm51, %v39, 0
    %v68 = vsel %vm51, %v40, 0
    %v71 = vsel %vm51, %v41, 0
    %v74 = vsel %vm51, %v42, 0
    %vm76 = vcmask 1043456
    %v78 = vsel %vm76, %v43, 0
    %80 = vmatprep.subr.mxu0 0.0
    %81 = vmatpush1.msra.mxu0 0.0
    %82 = vmatprep.subr.mxu0 0.0
    %83 = vmatpush1.msra.mxu0 0.0
    %84 = vmatprep.subr.mxu0 0.0
    %85 = vmatpush1.msra.mxu0 0.0
    %86 = vmatprep.subr.mxu0 0.0
    %87 = vmatpush1.msra.mxu0 0.0
    %88 = vmatprep.subr.mxu0 0.0
    %89 = vmatpush1.msra.mxu0 0.0
    %90 = vmatprep.subr.mxu0 0.0
    %91 = vmatpush1.msra.mxu0 0.0
    %92 = vmatprep.subr.mxu0 0.0
    %93 = vmatpush1.msra.mxu0 0.0
    %94 = vmatprep.subr.mxu0 0.0
    %95 = vmatpush1.msra.mxu0 0.0
    %96 = vmatprep.subr.mxu0 0.0
    %97 = vmatpush1.msra.mxu0 0.0
    %98 = vmatprep.subr.mxu0 0.0
    %99 = vmatpush1.msra.mxu0 0.0
    %100 = vmatprep.subr.mxu0 0.0
    %101 = vmatpush1.msra.mxu0 0.0
    %102 = vmatprep.subr.mxu0 0.0
    %103 = vmatpush1.msra.mxu0 0.0
    %104 = vmatprep.subr.mxu0 0.0
    %105 = vmatpush1.msra.mxu0 0.0
    %106 = vmatprep.subr.mxu0 0.0
    %107 = vmatpush1.msra.mxu0 0.0
    %108 = vmatprep.subr.mxu0 0.0
    %109 = vmatpush1.msra.mxu0 0.0
    %110 = vmatprep.subr.mxu0 0.0
    %111 = vmatpush1.msra.mxu0 %v78
    %112 = vmatprep.subr.mxu0 0.0
    %113 = vmatpush2.msra.mxu0 0.0
    %114 = vmatprep.subr.mxu0 0.0
    %115 = vmatpush2.msra.mxu0 0.0
    %116 = vmatprep.subr.mxu0 0.0
    %117 = vmatpush2.msra.mxu0 0.0
    %118 = vmatprep.subr.mxu0 0.0
    %119 = vmatpush2.msra.mxu0 0.0
    %120 = vmatprep.subr.mxu0 0.0
    %121 = vmatpush2.msra.mxu0 0.0
    %122 = vmatprep.subr.mxu0 0.0
    %123 = vmatpush2.msra.mxu0 0.0
    %124 = vmatprep.subr.mxu0 0.0
    %125 = vmatpush2.msra.mxu0 0.0
    %126 = vmatprep.subr.mxu0 0.0
    %127 = vmatpush2.msra.mxu0 0.0
    %128 = vmatprep.subr.mxu0 0.0
    %129 = vmatpush2.msra.mxu0 0.0
    %130 = vmatprep.subr.mxu0 0.0
    %131 = vmatpush2.msra.mxu0 0.0
    %132 = vmatprep.subr.mxu0 0.0
    %133 = vmatpush2.msra.mxu0 0.0
    %134 = vmatprep.subr.mxu0 0.0
    %135 = vmatpush2.msra.mxu0 0.0
    %136 = vmatprep.subr.mxu0 0.0
    %137 = vmatpush2.msra.mxu0 0.0
    %138 = vmatprep.subr.mxu0 0.0
    %139 = vmatpush2.msra.mxu0 0.0
    %140 = vmatprep.subr.mxu0 0.0
    %141 = vmatpush2.msra.mxu0 0.0
    %142 = vmatprep.subr.mxu0 0.0
    %143 = vmatpush2.msra.mxu0 0.0
    %144 = vmatprep.mubr.f32.mxu0 0.0
    %145 = vmatmul.mubr.f32.gmra.mxu0 %v53
    %v146 = vpop.f32.mrf.mxu0
    %v147 = vadd.f32 %v49, %v146
    %v148 = vpop.f32.mrf.mxu0
    %149 = vmatprep.mubr.f32.mxu0 0.0
    %150 = vmatmul.mubr.f32.gmra.mxu0 %v56
    %v151 = vpop.f32.mrf.mxu0
    %v152 = vadd.f32 %v49, %v151
    %v153 = vpop.f32.mrf.mxu0
    %154 = vmatprep.mubr.f32.mxu0 0.0
    %155 = vmatmul.mubr.f32.gmra.mxu0 %v59
    %v156 = vpop.f32.mrf.mxu0
    %v157 = vadd.f32 %v49, %v156
    %v158 = vpop.f32.mrf.mxu0
    %159 = vmatprep.mubr.f32.mxu0 0.0
    %160 = vmatmul.mubr.f32.gmra.mxu0 %v62
    %v161 = vpop.f32.mrf.mxu0
    %v162 = vadd.f32 %v49, %v161
    %v163 = vpop.f32.mrf.mxu0
    %164 = vmatprep.mubr.f32.mxu0 0.0
    %165 = vmatmul.mubr.f32.gmra.mxu0 %v65
    %v166 = vpop.f32.mrf.mxu0
    %v167 = vadd.f32 %v49, %v166
    %v168 = vpop.f32.mrf.mxu0
    %169 = vmatprep.mubr.f32.mxu0 0.0
    %170 = vmatmul.mubr.f32.gmra.mxu0 %v68
    %v171 = vpop.f32.mrf.mxu0
    %v172 = vadd.f32 %v49, %v171
    %v173 = vpop.f32.mrf.mxu0
    %174 = vmatprep.mubr.f32.mxu0 0.0
    %175 = vmatmul.mubr.f32.gmra.mxu0 %v71
    %v176 = vpop.f32.mrf.mxu0
    %v177 = vadd.f32 %v49, %v176
    %v178 = vpop.f32.mrf.mxu0
    %179 = vmatprep.mubr.f32.mxu0 0.0
    %180 = vmatmul.mubr.f32.gmra.mxu0 %v74
    %v181 = vpop.f32.mrf.mxu0
    %v182 = vadd.f32 %v49, %v181
    %v183 = vpop.f32.mrf.mxu0
    %184 = vdwg.mxu0
    %v185 = vmax.f32 %v147, 0.0
    %v186 = vmax.f32 %v152, 0.0
    %v187 = vmax.f32 %v157, 0.0
    %v188 = vmax.f32 %v162, 0.0
    %v189 = vmax.f32 %v167, 0.0
    %v190 = vmax.f32 %v172, 0.0
    %v191 = vmax.f32 %v177, 0.0
    %v192 = vmax.f32 %v182, 0.0
    %v193 = vld [vmem:[#allocation2] sm:$0xff]
    %v194 = vld [vmem:[#allocation2 + $0x8] sm:$0xff]
    %v195 = vld [vmem:[#allocation2 + $0x10] sm:$0xff]
    %v196 = vld [vmem:[#allocation2 + $0x18] sm:$0xff]
    %v197 = vld [vmem:[#allocation2 + $0x20] sm:$0xff]
    %v198 = vld [vmem:[#allocation2 + $0x28] sm:$0xff]
    %v199 = vld [vmem:[#allocation2 + $0x30] sm:$0xff]
    %v200 = vld [vmem:[#allocation2 + $0x38] sm:$0xff]
    %v201 = vld [vmem:[#allocation2 + $0x40] sm:$0xff]
    %v202 = vld [vmem:[#allocation2 + $0x48] sm:$0xff]
    %v203 = vld [vmem:[#allocation2 + $0x50] sm:$0xff]
    %v204 = vld [vmem:[#allocation2 + $0x58] sm:$0xff]
    %v205 = vld [vmem:[#allocation2 + $0x60] sm:$0xff]
    %v206 = vld [vmem:[#allocation2 + $0x68] sm:$0xff]
    %v207 = vld [vmem:[#allocation2 + $0x70] sm:$0xff]
    %v208 = vld [vmem:[#allocation2 + $0x78] sm:$0xff]
    %v209 = vld [vmem:[#allocation2 + $0x80] sm:$0xff]
    %v210 = vld [vmem:[#allocation2 + $0x88] sm:$0xff]
    %v211 = vld [vmem:[#allocation2 + $0x90] sm:$0xff]
    %v212 = vld [vmem:[#allocation2 + $0x98] sm:$0xff]
    %v213 = vld [vmem:[#allocation2 + $0xa0] sm:$0xff]
    %v214 = vld [vmem:[#allocation2 + $0xa8] sm:$0xff]
    %v215 = vld [vmem:[#allocation2 + $0xb0] sm:$0xff]
    %v216 = vld [vmem:[#allocation2 + $0xb8] sm:$0xff]
    %v217 = vld [vmem:[#allocation2 + $0xc0] sm:$0xff]
    %v218 = vld [vmem:[#allocation2 + $0xc8] sm:$0xff]
    %v219 = vld [vmem:[#allocation2 + $0xd0] sm:$0xff]
    %v220 = vld [vmem:[#allocation2 + $0xd8] sm:$0xff]
    %v221 = vld [vmem:[#allocation2 + $0xe0] sm:$0xff]
    %v222 = vld [vmem:[#allocation2 + $0xe8] sm:$0xff]
    %v223 = vld [vmem:[#allocation2 + $0xf0] sm:$0xff]
    %v224 = vld [vmem:[#allocation2 + $0xf8] sm:$0xff]
    %v225 = vld [vmem:[#allocation2 + $0x100] sm:$0xff]
    %v226 = vld [vmem:[#allocation2 + $0x108] sm:$0xff]
    %v227 = vld [vmem:[#allocation2 + $0x110] sm:$0xff]
    %v228 = vld [vmem:[#allocation2 + $0x118] sm:$0xff]
    %v229 = vld [vmem:[#allocation2 + $0x120] sm:$0xff]
    %v230 = vld [vmem:[#allocation2 + $0x128] sm:$0xff]
    %v231 = vld [vmem:[#allocation2 + $0x130] sm:$0xff]
    %v232 = vld [vmem:[#allocation2 + $0x138] sm:$0xff]
    %v233 = vld [vmem:[#allocation2 + $0x140] sm:$0xff]
    %v234 = vld [vmem:[#allocation2 + $0x148] sm:$0xff]
    %v235 = vld [vmem:[#allocation2 + $0x150] sm:$0xff]
    %v236 = vld [vmem:[#allocation2 + $0x158] sm:$0xff]
    %v237 = vld [vmem:[#allocation2 + $0x160] sm:$0xff]
    %v238 = vld [vmem:[#allocation2 + $0x168] sm:$0xff]
    %v239 = vld [vmem:[#allocation2 + $0x170] sm:$0xff]
    %v240 = vld [vmem:[#allocation2 + $0x178] sm:$0xff]
    %v241 = vld [vmem:[#allocation2 + $0x180] sm:$0xff]
    %v242 = vld [vmem:[#allocation2 + $0x188] sm:$0xff]
    %v243 = vld [vmem:[#allocation2 + $0x190] sm:$0xff]
    %v244 = vld [vmem:[#allocation2 + $0x198] sm:$0xff]
    %v245 = vld [vmem:[#allocation2 + $0x1a0] sm:$0xff]
    %v246 = vld [vmem:[#allocation2 + $0x1a8] sm:$0xff]
    %v247 = vld [vmem:[#allocation2 + $0x1b0] sm:$0xff]
    %v248 = vld [vmem:[#allocation2 + $0x1b8] sm:$0xff]
    %v249 = vld [vmem:[#allocation2 + $0x1c0] sm:$0xff]
    %v250 = vld [vmem:[#allocation2 + $0x1c8] sm:$0xff]
    %v251 = vld [vmem:[#allocation2 + $0x1d0] sm:$0xff]
    %v252 = vld [vmem:[#allocation2 + $0x1d8] sm:$0xff]
    %v253 = vld [vmem:[#allocation2 + $0x1e0] sm:$0xff]
    %v254 = vld [vmem:[#allocation2 + $0x1e8] sm:$0xff]
    %v255 = vld [vmem:[#allocation2 + $0x1f0] sm:$0xff]
    %v256 = vld [vmem:[#allocation2 + $0x1f8] sm:$0xff]
    %v257 = vld [vmem:[%s4] sm:$0xf]
    %v259 = vlaneseq
    %v260 = vshrl.u32 %v259, 7
    %v261 = vsub.s32 0, %v260
    %v262 = vrot.slane %v257, %v261
    %v263 = vlaneseq
    %v264 = vshrl.u32 %v263, 7
    %v265 = vsub.s32 1, %v264
    %v266 = vrot.slane %v257, %v265
    %v267 = vlaneseq
    %v268 = vshrl.u32 %v267, 7
    %v269 = vsub.s32 2, %v268
    %v270 = vrot.slane %v257, %v269
    %v271 = vlaneseq
    %v272 = vshrl.u32 %v271, 7
    %v273 = vsub.s32 3, %v272
    %v274 = vrot.slane %v257, %v273
    %279 = vmatprep.subr.mxu0 %v254
    %280 = vmatpush1.msra.mxu0 %v253
    %281 = vmatprep.subr.mxu0 %v250
    %282 = vmatpush1.msra.mxu0 %v249
    %283 = vmatprep.subr.mxu0 %v246
    %284 = vmatpush1.msra.mxu0 %v245
    %285 = vmatprep.subr.mxu0 %v242
    %286 = vmatpush1.msra.mxu0 %v241
    %287 = vmatprep.subr.mxu0 %v238
    %288 = vmatpush1.msra.mxu0 %v237
    %289 = vmatprep.subr.mxu0 %v234
    %290 = vmatpush1.msra.mxu0 %v233
    %291 = vmatprep.subr.mxu0 %v230
    %292 = vmatpush1.msra.mxu0 %v229
    %293 = vmatprep.subr.mxu0 %v226
    %294 = vmatpush1.msra.mxu0 %v225
    %295 = vmatprep.subr.mxu0 %v222
    %296 = vmatpush1.msra.mxu0 %v221
    %297 = vmatprep.subr.mxu0 %v218
    %298 = vmatpush1.msra.mxu0 %v217
    %299 = vmatprep.subr.mxu0 %v214
    %300 = vmatpush1.msra.mxu0 %v213
    %301 = vmatprep.subr.mxu0 %v210
    %302 = vmatpush1.msra.mxu0 %v209
    %303 = vmatprep.subr.mxu0 %v206
    %304 = vmatpush1.msra.mxu0 %v205
    %305 = vmatprep.subr.mxu0 %v202
    %306 = vmatpush1.msra.mxu0 %v201
    %307 = vmatprep.subr.mxu0 %v198
    %308 = vmatpush1.msra.mxu0 %v197
    %309 = vmatprep.subr.mxu0 %v194
    %310 = vmatpush1.msra.mxu0 %v193
    %311 = vmatprep.subr.mxu0 0.0
    %312 = vmatpush2.msra.mxu0 0.0
    %313 = vmatprep.subr.mxu0 0.0
    %314 = vmatpush2.msra.mxu0 0.0
    %315 = vmatprep.subr.mxu0 0.0
    %316 = vmatpush2.msra.mxu0 0.0
    %317 = vmatprep.subr.mxu0 0.0
    %318 = vmatpush2.msra.mxu0 0.0
    %319 = vmatprep.subr.mxu0 0.0
    %320 = vmatpush2.msra.mxu0 0.0
    %321 = vmatprep.subr.mxu0 0.0
    %322 = vmatpush2.msra.mxu0 0.0
    %323 = vmatprep.subr.mxu0 0.0
    %324 = vmatpush2.msra.mxu0 0.0
    %325 = vmatprep.subr.mxu0 0.0
    %326 = vmatpush2.msra.mxu0 0.0
    %327 = vmatprep.subr.mxu0 0.0
    %328 = vmatpush2.msra.mxu0 0.0
    %329 = vmatprep.subr.mxu0 0.0
    %330 = vmatpush2.msra.mxu0 0.0
    %331 = vmatprep.subr.mxu0 0.0
    %332 = vmatpush2.msra.mxu0 0.0
    %333 = vmatprep.subr.mxu0 0.0
    %334 = vmatpush2.msra.mxu0 0.0
    %335 = vmatprep.subr.mxu0 0.0
    %336 = vmatpush2.msra.mxu0 0.0
    %337 = vmatprep.subr.mxu0 0.0
    %338 = vmatpush2.msra.mxu0 0.0
    %339 = vmatprep.subr.mxu0 0.0
    %340 = vmatpush2.msra.mxu0 0.0
    %341 = vmatprep.subr.mxu0 0.0
    %342 = vmatpush2.msra.mxu0 0.0
    %343 = vmatprep.mubr.f32.mxu0 0.0
    %344 = vmatmul.mubr.f32.gmra.mxu0 %v185
    %v345 = vpop.f32.mrf.mxu0
    %v346 = vadd.f32 %v262, %v345
    %v347 = vpop.f32.mrf.mxu0
    %v348 = vadd.f32 %v266, %v347
    %349 = vmatprep.mubr.f32.mxu0 0.0
    %350 = vmatmul.mubr.f32.gmra.mxu0 %v186
    %v351 = vpop.f32.mrf.mxu0
    %v352 = vadd.f32 %v262, %v351
    %v353 = vpop.f32.mrf.mxu0
    %v354 = vadd.f32 %v266, %v353
    %355 = vmatprep.mubr.f32.mxu0 0.0
    %356 = vmatmul.mubr.f32.gmra.mxu0 %v187
    %v357 = vpop.f32.mrf.mxu0
    %v358 = vadd.f32 %v262, %v357
    %v359 = vpop.f32.mrf.mxu0
    %v360 = vadd.f32 %v266, %v359
    %361 = vmatprep.mubr.f32.mxu0 0.0
    %362 = vmatmul.mubr.f32.gmra.mxu0 %v188
    %v363 = vpop.f32.mrf.mxu0
    %v364 = vadd.f32 %v262, %v363
    %v365 = vpop.f32.mrf.mxu0
    %v366 = vadd.f32 %v266, %v365
    %367 = vmatprep.mubr.f32.mxu0 0.0
    %368 = vmatmul.mubr.f32.gmra.mxu0 %v189
    %v369 = vpop.f32.mrf.mxu0
    %v370 = vadd.f32 %v262, %v369
    %v371 = vpop.f32.mrf.mxu0
    %v372 = vadd.f32 %v266, %v371
    %373 = vmatprep.mubr.f32.mxu0 0.0
    %374 = vmatmul.mubr.f32.gmra.mxu0 %v190
    %v375 = vpop.f32.mrf.mxu0
    %v376 = vadd.f32 %v262, %v375
    %v377 = vpop.f32.mrf.mxu0
    %v378 = vadd.f32 %v266, %v377
    %379 = vmatprep.mubr.f32.mxu0 0.0
    %380 = vmatmul.mubr.f32.gmra.mxu0 %v191
    %v381 = vpop.f32.mrf.mxu0
    %v382 = vadd.f32 %v262, %v381
    %v383 = vpop.f32.mrf.mxu0
    %v384 = vadd.f32 %v266, %v383
    %385 = vmatprep.mubr.f32.mxu0 0.0
    %386 = vmatmul.mubr.f32.gmra.mxu0 %v192
    %v387 = vpop.f32.mrf.mxu0
    %v388 = vadd.f32 %v262, %v387
    %v389 = vpop.f32.mrf.mxu0
    %v390 = vadd.f32 %v266, %v389
    %391 = vdwg.mxu0
    %392 = vmatprep.subr.mxu0 %v256
    %393 = vmatpush1.msra.mxu0 %v255
    %394 = vmatprep.subr.mxu0 %v252
    %395 = vmatpush1.msra.mxu0 %v251
    %396 = vmatprep.subr.mxu0 %v248
    %397 = vmatpush1.msra.mxu0 %v247
    %398 = vmatprep.subr.mxu0 %v244
    %399 = vmatpush1.msra.mxu0 %v243
    %400 = vmatprep.subr.mxu0 %v240
    %401 = vmatpush1.msra.mxu0 %v239
    %402 = vmatprep.subr.mxu0 %v236
    %403 = vmatpush1.msra.mxu0 %v235
    %404 = vmatprep.subr.mxu0 %v232
    %405 = vmatpush1.msra.mxu0 %v231
    %406 = vmatprep.subr.mxu0 %v228
    %407 = vmatpush1.msra.mxu0 %v227
    %408 = vmatprep.subr.mxu0 %v224
    %409 = vmatpush1.msra.mxu0 %v223
    %410 = vmatprep.subr.mxu0 %v220
    %411 = vmatpush1.msra.mxu0 %v219
    %412 = vmatprep.subr.mxu0 %v216
    %413 = vmatpush1.msra.mxu0 %v215
    %414 = vmatprep.subr.mxu0 %v212
    %415 = vmatpush1.msra.mxu0 %v211
    %416 = vmatprep.subr.mxu0 %v208
    %417 = vmatpush1.msra.mxu0 %v207
    %418 = vmatprep.subr.mxu0 %v204
    %419 = vmatpush1.msra.mxu0 %v203
    %420 = vmatprep.subr.mxu0 %v200
    %421 = vmatpush1.msra.mxu0 %v199
    %422 = vmatprep.subr.mxu0 %v196
    %423 = vmatpush1.msra.mxu0 %v195
    %424 = vmatprep.subr.mxu0 0.0
    %425 = vmatpush2.msra.mxu0 0.0
    %426 = vmatprep.subr.mxu0 0.0
    %427 = vmatpush2.msra.mxu0 0.0
    %428 = vmatprep.subr.mxu0 0.0
    %429 = vmatpush2.msra.mxu0 0.0
    %430 = vmatprep.subr.mxu0 0.0
    %431 = vmatpush2.msra.mxu0 0.0
    %432 = vmatprep.subr.mxu0 0.0
    %433 = vmatpush2.msra.mxu0 0.0
    %434 = vmatprep.subr.mxu0 0.0
    %435 = vmatpush2.msra.mxu0 0.0
    %436 = vmatprep.subr.mxu0 0.0
    %437 = vmatpush2.msra.mxu0 0.0
    %438 = vmatprep.subr.mxu0 0.0
    %439 = vmatpush2.msra.mxu0 0.0
    %440 = vmatprep.subr.mxu0 0.0
    %441 = vmatpush2.msra.mxu0 0.0
    %442 = vmatprep.subr.mxu0 0.0
    %443 = vmatpush2.msra.mxu0 0.0
    %444 = vmatprep.subr.mxu0 0.0
    %445 = vmatpush2.msra.mxu0 0.0
    %446 = vmatprep.subr.mxu0 0.0
    %447 = vmatpush2.msra.mxu0 0.0
    %448 = vmatprep.subr.mxu0 0.0
    %449 = vmatpush2.msra.mxu0 0.0
    %450 = vmatprep.subr.mxu0 0.0
    %451 = vmatpush2.msra.mxu0 0.0
    %452 = vmatprep.subr.mxu0 0.0
    %453 = vmatpush2.msra.mxu0 0.0
    %454 = vmatprep.subr.mxu0 0.0
    %455 = vmatpush2.msra.mxu0 0.0
    %456 = vmatprep.mubr.f32.mxu0 0.0
    %457 = vmatmul.mubr.f32.gmra.mxu0 %v185
    %v458 = vpop.f32.mrf.mxu0
    %v459 = vadd.f32 %v270, %v458
    %v460 = vpop.f32.mrf.mxu0
    %v461 = vadd.f32 %v274, %v460
    %462 = vmatprep.mubr.f32.mxu0 0.0
    %463 = vmatmul.mubr.f32.gmra.mxu0 %v186
    %v464 = vpop.f32.mrf.mxu0
    %v465 = vadd.f32 %v270, %v464
    %v466 = vpop.f32.mrf.mxu0
    %v467 = vadd.f32 %v274, %v466
    %468 = vmatprep.mubr.f32.mxu0 0.0
    %469 = vmatmul.mubr.f32.gmra.mxu0 %v187
    %v470 = vpop.f32.mrf.mxu0
    %v471 = vadd.f32 %v270, %v470
    %v472 = vpop.f32.mrf.mxu0
    %v473 = vadd.f32 %v274, %v472
    %474 = vmatprep.mubr.f32.mxu0 0.0
    %475 = vmatmul.mubr.f32.gmra.mxu0 %v188
    %v476 = vpop.f32.mrf.mxu0
    %v477 = vadd.f32 %v270, %v476
    %v478 = vpop.f32.mrf.mxu0
    %v479 = vadd.f32 %v274, %v478
    %480 = vmatprep.mubr.f32.mxu0 0.0
    %481 = vmatmul.mubr.f32.gmra.mxu0 %v189
    %v482 = vpop.f32.mrf.mxu0
    %v483 = vadd.f32 %v270, %v482
    %v484 = vpop.f32.mrf.mxu0
    %v485 = vadd.f32 %v274, %v484
    %486 = vmatprep.mubr.f32.mxu0 0.0
    %487 = vmatmul.mubr.f32.gmra.mxu0 %v190
    %v488 = vpop.f32.mrf.mxu0
    %v489 = vadd.f32 %v270, %v488
    %v490 = vpop.f32.mrf.mxu0
    %v491 = vadd.f32 %v274, %v490
    %492 = vmatprep.mubr.f32.mxu0 0.0
    %493 = vmatmul.mubr.f32.gmra.mxu0 %v191
    %v494 = vpop.f32.mrf.mxu0
    %v495 = vadd.f32 %v270, %v494
    %v496 = vpop.f32.mrf.mxu0
    %v497 = vadd.f32 %v274, %v496
    %498 = vmatprep.mubr.f32.mxu0 0.0
    %499 = vmatmul.mubr.f32.gmra.mxu0 %v192
    %v500 = vpop.f32.mrf.mxu0
    %v501 = vadd.f32 %v270, %v500
    %v502 = vpop.f32.mrf.mxu0
    %v503 = vadd.f32 %v274, %v502
    %504 = vdwg.mxu0
    %505 = vst [vmem:[#allocation5] sm:$0xff] %v346
    %506 = vst [vmem:[#allocation5 + $0x8] sm:$0xff] %v348
    %507 = vst [vmem:[#allocation5 + $0x10] sm:$0xff] %v459
    %508 = vst [vmem:[#allocation5 + $0x18] sm:$0xff] %v461
    %509 = vst [vmem:[#allocation5 + $0x20] sm:$0xff] %v352
    %510 = vst [vmem:[#allocation5 + $0x28] sm:$0xff] %v354
    %511 = vst [vmem:[#allocation5 + $0x30] sm:$0xff] %v465
    %512 = vst [vmem:[#allocation5 + $0x38] sm:$0xff] %v467
    %513 = vst [vmem:[#allocation5 + $0x40] sm:$0xff] %v358
    %514 = vst [vmem:[#allocation5 + $0x48] sm:$0xff] %v360
    %515 = vst [vmem:[#allocation5 + $0x50] sm:$0xff] %v471
    %516 = vst [vmem:[#allocation5 + $0x58] sm:$0xff] %v473
    %517 = vst [vmem:[#allocation5 + $0x60] sm:$0xff] %v364
    %518 = vst [vmem:[#allocation5 + $0x68] sm:$0xff] %v366
    %519 = vst [vmem:[#allocation5 + $0x70] sm:$0xff] %v477
    %520 = vst [vmem:[#allocation5 + $0x78] sm:$0xff] %v479
    %521 = vst [vmem:[#allocation5 + $0x80] sm:$0xff] %v370
    %522 = vst [vmem:[#allocation5 + $0x88] sm:$0xff] %v372
    %523 = vst [vmem:[#allocation5 + $0x90] sm:$0xff] %v483
    %524 = vst [vmem:[#allocation5 + $0x98] sm:$0xff] %v485
    %525 = vst [vmem:[#allocation5 + $0xa0] sm:$0xff] %v376
    %526 = vst [vmem:[#allocation5 + $0xa8] sm:$0xff] %v378
    %527 = vst [vmem:[#allocation5 + $0xb0] sm:$0xff] %v489
    %528 = vst [vmem:[#allocation5 + $0xb8] sm:$0xff] %v491
    %529 = vst [vmem:[#allocation5 + $0xc0] sm:$0xff] %v382
    %530 = vst [vmem:[#allocation5 + $0xc8] sm:$0xff] %v384
    %531 = vst [vmem:[#allocation5 + $0xd0] sm:$0xff] %v495
    %532 = vst [vmem:[#allocation5 + $0xd8] sm:$0xff] %v497
    %533 = vst [vmem:[#allocation5 + $0xe0] sm:$0xff] %v388
    %534 = vst [vmem:[#allocation5 + $0xe8] sm:$0xff] %v390
    %535 = vst [vmem:[#allocation5 + $0xf0] sm:$0xff] %v501
    %536 = vst [vmem:[#allocation5 + $0xf8] sm:$0xff] %v503
    // Predicated region
    $region26: #{tpu_custom_call.1} parent=1 // pred_check
      _
    $region27: #{tpu_custom_call.1} parent=1 // pred_check_branch
      %538 = sbr.rel (0) target = $region29
    $region28: #{tpu_custom_call.1} parent=1 // pred_region
      %s540 = ssub.s32 4096, 4096
      %541 = vsyncadd [#allocation4], %s540
      %s542 = sshll.u32 [#allocation5], 4
      %s543 = int_to_ptr.vmem [resolvable:$true] %s542
      %548 = dma.vmem_to_hbm [thread:$0]  %s543, 4096, %s5, [#allocation4], 512, 512, 32
    $region29: #{tpu_custom_call.1} parent=1 // pred_fallthru
      _
    // Predicated region
    $region30: #{tpu_custom_call.1} parent=1 // pred_check
      _
    $region31: #{tpu_custom_call.1} parent=1 // pred_check_branch
      %550 = sbr.rel (0) target = $region33
    $region32: #{tpu_custom_call.1} parent=1 // pred_region
      %551 = dma.done [#allocation4], 4096
    $region33: #{tpu_custom_call.1} parent=1 // pred_fallthru
      _
    %552 = vsyncpa [#allocation3], 1
    %553 = vsyncpa [#allocation4], 1

</llo_original>
